<compile_context>
chip_gen: v5e
topology: v5e:2x2
jax: 0.10.0
libtpu: 0.0.40
codegen_flags: <defaults>
</compile_context>

<pallas_src>
import functools

import jax
import jax.numpy as jnp
from jax import lax
from jax.experimental import pallas as pl
from jax.experimental.pallas import tpu as pltpu


def _round_up(x, m):
    return (x + m - 1) // m * m


def _entity_detect_kernel(out_size, idx_ref, ht_ref, emb_ref, w1h_ref, w1l_ref,
                          b1_ref, w2_ref, b2_ref, vtp_ref, h2_ref, y_ref):
    rows = idx_ref.shape[0]
    n_lab = emb_ref.shape[0]
    out_pad = w2_ref.shape[1]

    # --- embedding lookup as a one-hot matmul (MXU, no dynamic gather) -------
    idx = idx_ref[...]                                            # (rows, 1) i32
    lab = lax.broadcasted_iota(jnp.int32, (rows, n_lab), 1)
    one_hot = (lab == idx).astype(emb_ref.dtype)                  # (rows, n_lab)
    v_tp = jnp.dot(one_hot, emb_ref[...],
                   preferred_element_type=jnp.float32)            # (rows, Lemb_pad)
    vtp_ref[...] = v_tp.astype(vtp_ref.dtype)

    # --- h1 = [ht, v_tp] @ W1 + b1, computed as split matmuls (no concat) ----
    h1 = jnp.dot(ht_ref[...], w1h_ref[...],
                 preferred_element_type=jnp.float32)
    h1 = h1 + jnp.dot(v_tp.astype(w1l_ref.dtype), w1l_ref[...],
                      preferred_element_type=jnp.float32)
    h1 = h1 + b1_ref[...]                                         # (rows, hidden)

    # --- h2 = h1 @ W2 + b2 (lane-padded to out_pad, zero-padded columns) -----
    h2 = jnp.dot(h1.astype(w2_ref.dtype), w2_ref[...],
                 preferred_element_type=jnp.float32)
    h2 = h2 + b2_ref[...]                                         # (rows, out_pad)
    h2_ref[...] = h2.astype(h2_ref.dtype)

    # --- y = argmax over the real out_size lanes (softmax is monotone) -------
    lane = lax.broadcasted_iota(jnp.int32, (rows, out_pad), 1)
    masked = jnp.where(lane < out_size, h2, jnp.full_like(h2, -jnp.inf))
    m = jnp.max(masked, axis=-1, keepdims=True)
    first = jnp.min(jnp.where(masked >= m, lane, out_pad),
                    axis=-1, keepdims=True)                       # first arg-max
    y_ref[...] = first.astype(jnp.int32)


def entity_detect(ht, entity_p, params, *, row_tile=None):
    """ht: (B, hidden), entity_p: (B,) int labels -> (v_tp, h_2, y_out)."""
    B, H = ht.shape
    emb = params["embed"]                 # (out_size, Lemb)
    w1, b1 = params["w1"], params["b1"]   # (H+Lemb, hidden), (hidden,)
    w2, b2 = params["w2"], params["b2"]   # (hidden, out_size), (out_size,)
    out_size, lemb = emb.shape
    hidden = w1.shape[1]

    # Row tiling over the batch (8-sublane aligned, up to 256 rows per step).
    if row_tile is None:
        row_tile = min(256, _round_up(B, 8))
    b_pad = _round_up(B, row_tile)

    # Lane padding so all large stores are 128-lane dense.
    lemb_pad = _round_up(lemb, 128)
    out_pad = _round_up(out_size, 128)

    # Split W1 row-wise (ht part / label-embed part) and zero-pad lanes.
    w1h = w1[:H]
    w1l = jnp.pad(w1[H:], ((0, lemb_pad - lemb), (0, 0)))
    emb_p = jnp.pad(emb, ((0, 0), (0, lemb_pad - lemb)))
    w2_p = jnp.pad(w2, ((0, 0), (0, out_pad - out_size)))
    b2_p = jnp.pad(b2, (0, out_pad - out_size)).reshape(1, out_pad)
    b1_2d = b1.reshape(1, hidden)

    ht_p = jnp.pad(ht, ((0, b_pad - B), (0, 0)))
    idx_p = jnp.pad(entity_p.astype(jnp.int32), (0, b_pad - B)).reshape(b_pad, 1)

    grid = (b_pad // row_tile,)
    kernel = functools.partial(_entity_detect_kernel, out_size)

    vtp_pad, h2_pad, y_pad = pl.pallas_call(
        kernel,
        out_shape=(
            jax.ShapeDtypeStruct((b_pad, lemb_pad), ht.dtype),
            jax.ShapeDtypeStruct((b_pad, out_pad), ht.dtype),
            jax.ShapeDtypeStruct((b_pad, 1), jnp.int32),
        ),
        grid_spec=pltpu.PrefetchScalarGridSpec(
            num_scalar_prefetch=0,
            grid=grid,
            in_specs=[
                pl.BlockSpec((row_tile, 1), lambda i: (i, 0)),        # entity_p
                pl.BlockSpec((row_tile, H), lambda i: (i, 0)),        # ht
                pl.BlockSpec((out_size, lemb_pad), lambda i: (0, 0)),  # embed
                pl.BlockSpec((H, hidden), lambda i: (0, 0)),           # W1_h
                pl.BlockSpec((lemb_pad, hidden), lambda i: (0, 0)),    # W1_l
                pl.BlockSpec((1, hidden), lambda i: (0, 0)),           # b1
                pl.BlockSpec((hidden, out_pad), lambda i: (0, 0)),     # W2 (padded)
                pl.BlockSpec((1, out_pad), lambda i: (0, 0)),          # b2 (padded)
            ],
            out_specs=(
                pl.BlockSpec((row_tile, lemb_pad), lambda i: (i, 0)),  # v_tp
                pl.BlockSpec((row_tile, out_pad), lambda i: (i, 0)),   # h_2
                pl.BlockSpec((row_tile, 1), lambda i: (i, 0)),         # y_out
            ),
        ),
        compiler_params=pltpu.CompilerParams(
            dimension_semantics=("parallel",)),
    )(idx_p, ht_p, emb_p, w1h, w1l, b1_2d, w2_p, b2_p)

    v_tp = vtp_pad[:B, :lemb]
    h_2 = h2_pad[:B, :out_size]
    y_out = y_pad[:B, 0]
    return v_tp, h_2, y_out


def _reference(ht, entity_p, params):
    v_tp = params["embed"][entity_p]
    h1 = jnp.concatenate([ht, v_tp], axis=-1) @ params["w1"] + params["b1"]
    h2 = h1 @ params["w2"] + params["b2"]
    y = jnp.argmax(jax.nn.softmax(h2, axis=-1), axis=-1)
    return v_tp, h2, y


def init_params(key, label_embed_size, hidden_size, out_size):
    F = hidden_size + label_embed_size
    k = jax.random.split(key, 5)
    s = 0.1
    return {
        "embed": s * jax.random.normal(k[0], (out_size, label_embed_size), jnp.float32),
        "w1": s * jax.random.normal(k[1], (F, hidden_size), jnp.float32),
        "b1": s * jax.random.normal(k[2], (hidden_size,), jnp.float32),
        "w2": s * jax.random.normal(k[3], (hidden_size, out_size), jnp.float32),
        "b2": s * jax.random.normal(k[4], (out_size,), jnp.float32),
    }


if __name__ == "__main__":
    B = 8
    hidden_size, label_embed_size, out_size = 32, 16, 8

    key = jax.random.PRNGKey(0)
    kh, ke, kp = jax.random.split(key, 3)
    ht = jax.random.normal(kh, (B, hidden_size), jnp.float32)
    entity_p = jax.random.randint(ke, (B,), 0, out_size, jnp.int32)
    params = init_params(kp, label_embed_size, hidden_size, out_size)

    v_tp, h_2, y_out = entity_detect(ht, entity_p, params)
    (v_tp, h_2, y_out) = jax.block_until_ready((v_tp, h_2, y_out))

    v_ref, h_ref, y_ref = _reference(ht, entity_p, params)
    assert v_tp.shape == (B, label_embed_size)
    assert h_2.shape == (B, out_size)
    assert y_out.shape == (B,)
    assert jnp.allclose(v_tp, v_ref, atol=1e-4, rtol=1e-4), "v_tp mismatch"
    assert jnp.allclose(h_2, h_ref, atol=1e-4, rtol=1e-4), "h_2 mismatch"
    assert jnp.array_equal(y_out, y_ref.astype(jnp.int32)), "y_out mismatch"

    print("KERNEL_OK")
</pallas_src>

<mosaic_0001>
module attributes {stable_mosaic.version = 11 : i64} {
  func.func @_entity_detect_kernel(%arg0: i32, %arg1: memref<8x1xi32, #tpu.memory_space<vmem>>, %arg2: memref<8x32xf32, #tpu.memory_space<vmem>>, %arg3: memref<8x128xf32, #tpu.memory_space<vmem>>, %arg4: memref<32x32xf32, #tpu.memory_space<vmem>>, %arg5: memref<128x32xf32, #tpu.memory_space<vmem>>, %arg6: memref<1x32xf32, #tpu.memory_space<vmem>>, %arg7: memref<32x128xf32, #tpu.memory_space<vmem>>, %arg8: memref<1x128xf32, #tpu.memory_space<vmem>>, %arg9: memref<8x128xf32, #tpu.memory_space<vmem>>, %arg10: memref<8x128xf32, #tpu.memory_space<vmem>>, %arg11: memref<8x1xi32, #tpu.memory_space<vmem>>) attributes {dimension_semantics = [#tpu.dimension_semantics<parallel>], iteration_bounds = array<i64: 1>, scalar_prefetch = 0 : i64, scratch_operands = 0 : i64, tpu.core_type = #tpu.core_type<tc>, window_params = [{transform_indices = @transform_0, window_bounds = array<i64: 8, 1>}, {transform_indices = @transform_1, window_bounds = array<i64: 8, 32>}, {pipeline_mode = #tpu.pipeline_mode<synchronous>, transform_indices = @transform_2, window_bounds = array<i64: 8, 128>}, {pipeline_mode = #tpu.pipeline_mode<synchronous>, transform_indices = @transform_3, window_bounds = array<i64: 32, 32>}, {pipeline_mode = #tpu.pipeline_mode<synchronous>, transform_indices = @transform_4, window_bounds = array<i64: 128, 32>}, {pipeline_mode = #tpu.pipeline_mode<synchronous>, transform_indices = @transform_5, window_bounds = array<i64: 1, 32>}, {pipeline_mode = #tpu.pipeline_mode<synchronous>, transform_indices = @transform_6, window_bounds = array<i64: 32, 128>}, {pipeline_mode = #tpu.pipeline_mode<synchronous>, transform_indices = @transform_7, window_bounds = array<i64: 1, 128>}, {transform_indices = @transform_8, window_bounds = array<i64: 8, 128>}, {transform_indices = @transform_9, window_bounds = array<i64: 8, 128>}, {transform_indices = @transform_10, window_bounds = array<i64: 8, 1>}]} {
    %c0 = arith.constant 0 : index
    %c0_0 = arith.constant 0 : index
    %0 = vector.load %arg1[%c0, %c0_0] : memref<8x1xi32, #tpu.memory_space<vmem>>, vector<8x1xi32>
    %1 = tpu.iota {dimensions = array<i32: 1>} : vector<8x8xi32>
    %2 = vector.broadcast %0 : vector<8x1xi32> to vector<8x8xi32>
    %3 = arith.cmpi eq, %1, %2 : vector<8x8xi32>
    %4 = arith.extui %3 : vector<8x8xi1> to vector<8x8xi32>
    %5 = arith.sitofp %4 : vector<8x8xi32> to vector<8x8xf32>
    %c0_1 = arith.constant 0 : index
    %c0_2 = arith.constant 0 : index
    %6 = vector.load %arg3[%c0_1, %c0_2] : memref<8x128xf32, #tpu.memory_space<vmem>>, vector<8x128xf32>
    %cst = arith.constant dense<0.000000e+00> : vector<8x128xf32>
    %7 = tpu.matmul %5, %6, %cst {dimension_numbers = #tpu.dot_dimension_numbers<[1], [0], [0], [1], [0, 0, 1, 1], [], []>} : vector<8x8xf32>, vector<8x128xf32>, vector<8x128xf32> -> vector<8x128xf32>
    %c0_3 = arith.constant 0 : index
    %c0_4 = arith.constant 0 : index
    %8 = vector.load %arg9[%c0_3, %c0_4] : memref<8x128xf32, #tpu.memory_space<vmem>>, vector<8x128xf32>
    tpu.vector_store %arg9[%c0_3, %c0_4], %7 {strides = array<i32>} : memref<8x128xf32, #tpu.memory_space<vmem>>, vector<8x128xf32>,
    %c0_5 = arith.constant 0 : index
    %c0_6 = arith.constant 0 : index
    %9 = vector.load %arg2[%c0_5, %c0_6] : memref<8x32xf32, #tpu.memory_space<vmem>>, vector<8x32xf32>
    %c0_7 = arith.constant 0 : index
    %c0_8 = arith.constant 0 : index
    %10 = vector.load %arg4[%c0_7, %c0_8] : memref<32x32xf32, #tpu.memory_space<vmem>>, vector<32x32xf32>
    %cst_9 = arith.constant dense<0.000000e+00> : vector<8x32xf32>
    %11 = tpu.matmul %9, %10, %cst_9 {dimension_numbers = #tpu.dot_dimension_numbers<[1], [0], [0], [1], [0, 0, 1, 1], [], []>} : vector<8x32xf32>, vector<32x32xf32>, vector<8x32xf32> -> vector<8x32xf32>
    %c0_10 = arith.constant 0 : index
    %c0_11 = arith.constant 0 : index
    %12 = vector.load %arg5[%c0_10, %c0_11] : memref<128x32xf32, #tpu.memory_space<vmem>>, vector<128x32xf32>
    %cst_12 = arith.constant dense<0.000000e+00> : vector<8x32xf32>
    %13 = tpu.matmul %7, %12, %cst_12 {dimension_numbers = #tpu.dot_dimension_numbers<[1], [0], [0], [1], [0, 0, 1, 1], [], []>} : vector<8x128xf32>, vector<128x32xf32>, vector<8x32xf32> -> vector<8x32xf32>
    %14 = arith.addf %11, %13 : vector<8x32xf32>
    %c0_13 = arith.constant 0 : index
    %c0_14 = arith.constant 0 : index
    %15 = vector.load %arg6[%c0_13, %c0_14] : memref<1x32xf32, #tpu.memory_space<vmem>>, vector<1x32xf32>
    %16 = vector.broadcast %15 : vector<1x32xf32> to vector<8x32xf32>
    %17 = arith.addf %14, %16 : vector<8x32xf32>
    %c0_15 = arith.constant 0 : index
    %c0_16 = arith.constant 0 : index
    %18 = vector.load %arg7[%c0_15, %c0_16] : memref<32x128xf32, #tpu.memory_space<vmem>>, vector<32x128xf32>
    %cst_17 = arith.constant dense<0.000000e+00> : vector<8x128xf32>
    %19 = tpu.matmul %17, %18, %cst_17 {dimension_numbers = #tpu.dot_dimension_numbers<[1], [0], [0], [1], [0, 0, 1, 1], [], []>} : vector<8x32xf32>, vector<32x128xf32>, vector<8x128xf32> -> vector<8x128xf32>
    %c0_18 = arith.constant 0 : index
    %c0_19 = arith.constant 0 : index
    %20 = vector.load %arg8[%c0_18, %c0_19] : memref<1x128xf32, #tpu.memory_space<vmem>>, vector<1x128xf32>
    %21 = vector.broadcast %20 : vector<1x128xf32> to vector<8x128xf32>
    %22 = arith.addf %19, %21 : vector<8x128xf32>
    %c0_20 = arith.constant 0 : index
    %c0_21 = arith.constant 0 : index
    %23 = vector.load %arg10[%c0_20, %c0_21] : memref<8x128xf32, #tpu.memory_space<vmem>>, vector<8x128xf32>
    tpu.vector_store %arg10[%c0_20, %c0_21], %22 {strides = array<i32>} : memref<8x128xf32, #tpu.memory_space<vmem>>, vector<8x128xf32>,
    %24 = tpu.iota {dimensions = array<i32: 1>} : vector<8x128xi32>
    %c8_i32 = arith.constant 8 : i32
    %25 = vector.broadcast %c8_i32 : i32 to vector<8x128xi32>
    %26 = arith.cmpi slt, %24, %25 : vector<8x128xi32>
    %cst_22 = arith.constant 0xFF800000 : f32
    %27 = vector.broadcast %cst_22 : f32 to vector<8x128xf32>
    %28 = arith.select %26, %22, %27 : vector<8x128xi1>, vector<8x128xf32>
    %cst_23 = arith.constant dense<0xFF800000> : vector<8xf32>
    %29 = vector.multi_reduction <maximumf>, %28, %cst_23 [1] : vector<8x128xf32> to vector<8xf32>
    %30 = vector.shape_cast %29 : vector<8xf32> to vector<8x1xf32>
    %31 = vector.broadcast %30 : vector<8x1xf32> to vector<8x128xf32>
    %32 = arith.cmpf oge, %28, %31 : vector<8x128xf32>
    %c128_i32 = arith.constant 128 : i32
    %33 = vector.broadcast %c128_i32 : i32 to vector<8x128xi32>
    %34 = arith.select %32, %24, %33 : vector<8x128xi1>, vector<8x128xi32>
    %cst_24 = arith.constant dense<2147483647> : vector<8xi32>
    %35 = vector.multi_reduction <minsi>, %34, %cst_24 [1] : vector<8x128xi32> to vector<8xi32>
    %36 = vector.shape_cast %35 : vector<8xi32> to vector<8x1xi32>
    %c0_25 = arith.constant 0 : index
    %c0_26 = arith.constant 0 : index
    %37 = vector.load %arg11[%c0_25, %c0_26] : memref<8x1xi32, #tpu.memory_space<vmem>>, vector<8x1xi32>
    tpu.vector_store %arg11[%c0_25, %c0_26], %36 {strides = array<i32>} : memref<8x1xi32, #tpu.memory_space<vmem>>, vector<8x1xi32>,
    return
  }
  func.func @transform_0(%arg0: i32) -> (i32, i32) {
    %c0_i32 = arith.constant 0 : i32
    %c0_i32_0 = arith.constant 0 : i32
    return %arg0, %c0_i32 : i32, i32
  }
  func.func @transform_1(%arg0: i32) -> (i32, i32) {
    %c0_i32 = arith.constant 0 : i32
    %c0_i32_0 = arith.constant 0 : i32
    return %arg0, %c0_i32 : i32, i32
  }
  func.func @transform_2(%arg0: i32) -> (i32, i32) {
    %c0_i32 = arith.constant 0 : i32
    %c0_i32_0 = arith.constant 0 : i32
    %c0_i32_1 = arith.constant 0 : i32
    return %c0_i32, %c0_i32_0 : i32, i32
  }
  func.func @transform_3(%arg0: i32) -> (i32, i32) {
    %c0_i32 = arith.constant 0 : i32
    %c0_i32_0 = arith.constant 0 : i32
    %c0_i32_1 = arith.constant 0 : i32
    return %c0_i32, %c0_i32_0 : i32, i32
  }
  func.func @transform_4(%arg0: i32) -> (i32, i32) {
    %c0_i32 = arith.constant 0 : i32
    %c0_i32_0 = arith.constant 0 : i32
    %c0_i32_1 = arith.constant 0 : i32
    return %c0_i32, %c0_i32_0 : i32, i32
  }
  func.func @transform_5(%arg0: i32) -> (i32, i32) {
    %c0_i32 = arith.constant 0 : i32
    %c0_i32_0 = arith.constant 0 : i32
    %c0_i32_1 = arith.constant 0 : i32
    return %c0_i32, %c0_i32_0 : i32, i32
  }
  func.func @transform_6(%arg0: i32) -> (i32, i32) {
    %c0_i32 = arith.constant 0 : i32
    %c0_i32_0 = arith.constant 0 : i32
    %c0_i32_1 = arith.constant 0 : i32
    return %c0_i32, %c0_i32_0 : i32, i32
  }
  func.func @transform_7(%arg0: i32) -> (i32, i32) {
    %c0_i32 = arith.constant 0 : i32
    %c0_i32_0 = arith.constant 0 : i32
    %c0_i32_1 = arith.constant 0 : i32
    return %c0_i32, %c0_i32_0 : i32, i32
  }
  func.func @transform_8(%arg0: i32) -> (i32, i32) {
    %c0_i32 = arith.constant 0 : i32
    %c0_i32_0 = arith.constant 0 : i32
    return %arg0, %c0_i32 : i32, i32
  }
  func.func @transform_9(%arg0: i32) -> (i32, i32) {
    %c0_i32 = arith.constant 0 : i32
    %c0_i32_0 = arith.constant 0 : i32
    return %arg0, %c0_i32 : i32, i32
  }
  func.func @transform_10(%arg0: i32) -> (i32, i32) {
    %c0_i32 = arith.constant 0 : i32
    %c0_i32_0 = arith.constant 0 : i32
    return %arg0, %c0_i32 : i32, i32
  }
}

</mosaic_0001>

<llo_original>
// kernel: tpu_custom_call.1
$region0: #{tpu_custom_call.1}
  #allocation0 [shape = 'u32[]', space=smem, size = 0x4, offset = 0x4, fixed_abs, tag = 'smem constant byte address 0x4 - core index']
  #allocation1 [shape = 'u32[72,128]{1,0:T(1,128)}', space=vmem, size = 0x9000, scoped, tag = 'internal scratch']
  %s0 = inlined_call_operand.vmem [shape: s32[8,1], index: 0, kind: input, shape index: {}]
  %s1 = inlined_call_operand.vmem [shape: f32[8,32], index: 1, kind: input, shape index: {}]
  %s2 = inlined_call_operand.vmem [shape: f32[8,128], index: 2, kind: input, shape index: {}]
  %s3 = inlined_call_operand.vmem [shape: f32[32,32], index: 3, kind: input, shape index: {}]
  %s4 = inlined_call_operand.vmem [shape: f32[128,32], index: 4, kind: input, shape index: {}]
  %s5 = inlined_call_operand.vmem [shape: f32[1,32], index: 5, kind: input, shape index: {}]
  %s6 = inlined_call_operand.vmem [shape: f32[32,128], index: 6, kind: input, shape index: {}]
  %s7 = inlined_call_operand.vmem [shape: f32[1,128], index: 7, kind: input, shape index: {}]
  %s8 = inlined_call_operand.hbm [shape: f32[8,128], index: 8, kind: output, shape index: {0}]
  %s9 = inlined_call_operand.hbm [shape: f32[8,128], index: 9, kind: output, shape index: {1}]
  %s10 = inlined_call_operand.vmem [shape: s32[8,1], index: 10, kind: output, shape index: {2}]
  %11 = xla_tuple %s8, %s9, %s10
  %s12 = sld [smem:[#allocation0]]
  $region58: #{tpu_custom_call.1} parent=0
    _
  %s14 = ssub.s32 1, %s12
  %s15 = scalar_select 0, %s14, %s12
  $region1: #{tpu_custom_call.1} parent=0
    #allocation2 [shape = 'u8[4096]{0}', space=vmem, size = 0x1000, scoped, tag = 'output window, operand 0, single buffered']
    #allocation3 [shape = 's32[1]{0}', space=sflag, size = 0x4, scoped, tag = 'scoped memory for tpu_custom_call.1']
    #allocation4 [shape = 'u8[4096]{0}', space=vmem, size = 0x1000, scoped, tag = 'output window, operand 1, single buffered']
    #allocation5 [shape = 's32[1]{0}', space=sflag, size = 0x4, scoped, tag = 'scoped memory for tpu_custom_call.1']
    %16 = vsyncpa [#allocation3], 0
    %17 = vsyncpa [#allocation5], 0
    // Predicated region
    $region2: #{tpu_custom_call.1} parent=1 // pred_check
      _
    $region3: #{tpu_custom_call.1} parent=1 // pred_check_branch
      %19 = sbr.rel (0) target = $region5
    $region4: #{tpu_custom_call.1} parent=1 // pred_region
      _
    $region5: #{tpu_custom_call.1} parent=1 // pred_fallthru
      _
    // Predicated region
    $region6: #{tpu_custom_call.1} parent=1 // pred_check
      _
    $region7: #{tpu_custom_call.1} parent=1 // pred_check_branch
      %21 = sbr.rel (0) target = $region9
    $region8: #{tpu_custom_call.1} parent=1 // pred_region
      _
    $region9: #{tpu_custom_call.1} parent=1 // pred_fallthru
      _
    // Predicated region
    $region10: #{tpu_custom_call.1} parent=1 // pred_check
      _
    $region11: #{tpu_custom_call.1} parent=1 // pred_check_branch
      %23 = sbr.rel (0) target = $region13
    $region12: #{tpu_custom_call.1} parent=1 // pred_region
      _
    $region13: #{tpu_custom_call.1} parent=1 // pred_fallthru
      _
    // Predicated region
    $region14: #{tpu_custom_call.1} parent=1 // pred_check
      _
    $region15: #{tpu_custom_call.1} parent=1 // pred_check_branch
      %25 = sbr.rel (0) target = $region17
    $region16: #{tpu_custom_call.1} parent=1 // pred_region
      _
    $region17: #{tpu_custom_call.1} parent=1 // pred_fallthru
      _
    // Predicated region
    $region18: #{tpu_custom_call.1} parent=1 // pred_check
      _
    $region19: #{tpu_custom_call.1} parent=1 // pred_check_branch
      %27 = sbr.rel (0) target = $region21
    $region20: #{tpu_custom_call.1} parent=1 // pred_region
      _
    $region21: #{tpu_custom_call.1} parent=1 // pred_fallthru
      _
    // Predicated region
    $region22: #{tpu_custom_call.1} parent=1 // pred_check
      _
    $region23: #{tpu_custom_call.1} parent=1 // pred_check_branch
      %29 = sbr.rel (0) target = $region25
    $region24: #{tpu_custom_call.1} parent=1 // pred_region
      _
    $region25: #{tpu_custom_call.1} parent=1 // pred_fallthru
      _
    // Predicated region
    $region26: #{tpu_custom_call.1} parent=1 // pred_check
      _
    $region27: #{tpu_custom_call.1} parent=1 // pred_check_branch
      %31 = sbr.rel (0) target = $region29
    $region28: #{tpu_custom_call.1} parent=1 // pred_region
      _
    $region29: #{tpu_custom_call.1} parent=1 // pred_fallthru
      _
    // Predicated region
    $region30: #{tpu_custom_call.1} parent=1 // pred_check
      _
    $region31: #{tpu_custom_call.1} parent=1 // pred_check_branch
      %33 = sbr.rel (0) target = $region33
    $region32: #{tpu_custom_call.1} parent=1 // pred_region
      _
    $region33: #{tpu_custom_call.1} parent=1 // pred_fallthru
      _
    %v34 = vld [vmem:[%s0] sm:$0xff]
    %v35 = vlaneseq
    %v36 = vand.u32 %v35, 127
    %37 = vset.pattern.permute.xlu0 0
    %38 = vperm.xlu0 %37, %v34
    %v39 = vpop.permute.xlu0 %38
    %vm40 = vcmp.eq.s32.totalorder %v36, %v39
    %v41 = vsel %vm40, 1, 0
    %v42 = vcvt.s32.f32 %v41
    %v43 = vld [vmem:[%s2] sm:$0xff]
    %vm44 = vcmask 64512
    %v46 = vsel %vm44, %v42, 0
    %48 = vmatpush.msra.mxu0 0.0
    %49 = vmatpush.msra.mxu0 0.0
    %50 = vmatpush.msra.mxu0 0.0
    %51 = vmatpush.msra.mxu0 0.0
    %52 = vmatpush.msra.mxu0 0.0
    %53 = vmatpush.msra.mxu0 0.0
    %54 = vmatpush.msra.mxu0 0.0
    %55 = vmatpush.msra.mxu0 0.0
    %56 = vmatpush.msra.mxu0 0.0
    %57 = vmatpush.msra.mxu0 0.0
    %58 = vmatpush.msra.mxu0 0.0
    %59 = vmatpush.msra.mxu0 0.0
    %60 = vmatpush.msra.mxu0 0.0
    %61 = vmatpush.msra.mxu0 0.0
    %62 = vmatpush.msra.mxu0 0.0
    %63 = vmatpush.msra.mxu0 %v43
    %64 = vmatmul.f32.gmra.mxu0 %v46
    %v65 = vpop.f32.mrf.mxu0
    %v66 = vadd.f32 0.0, %v65
    %67 = vdwg.mxu0
    %68 = vst [vmem:[#allocation2] sm:$0xff] %v66
    %v69 = vld [vmem:[%s1] sm:$0xff]
    %v70 = vld [vmem:[%s3] sm:$0xff]
    %v71 = vld [vmem:[%s3 + $0x8] sm:$0xff]
    %v72 = vld [vmem:[%s3 + $0x10] sm:$0xff]
    %v73 = vld [vmem:[%s3 + $0x18] sm:$0xff]
    %v74 = vld [vmem:[%s4] sm:$0xff]
    %v75 = vld [vmem:[%s4 + $0x8] sm:$0xff]
    %v76 = vld [vmem:[%s4 + $0x10] sm:$0xff]
    %v77 = vld [vmem:[%s4 + $0x18] sm:$0xff]
    %v78 = vld [vmem:[%s4 + $0x20] sm:$0xff]
    %v79 = vld [vmem:[%s4 + $0x28] sm:$0xff]
    %v80 = vld [vmem:[%s4 + $0x30] sm:$0xff]
    %v81 = vld [vmem:[%s4 + $0x38] sm:$0xff]
    %v82 = vld [vmem:[%s4 + $0x40] sm:$0xff]
    %v83 = vld [vmem:[%s4 + $0x48] sm:$0xff]
    %v84 = vld [vmem:[%s4 + $0x50] sm:$0xff]
    %v85 = vld [vmem:[%s4 + $0x58] sm:$0xff]
    %v86 = vld [vmem:[%s4 + $0x60] sm:$0xff]
    %v87 = vld [vmem:[%s4 + $0x68] sm:$0xff]
    %v88 = vld [vmem:[%s4 + $0x70] sm:$0xff]
    %v89 = vld [vmem:[%s4 + $0x78] sm:$0xff]
    %90 = vmatpush.msra.mxu0 %v89
    %91 = vmatpush.msra.mxu0 %v88
    %92 = vmatpush.msra.mxu0 %v87
    %93 = vmatpush.msra.mxu0 %v86
    %94 = vmatpush.msra.mxu0 %v85
    %95 = vmatpush.msra.mxu0 %v84
    %96 = vmatpush.msra.mxu0 %v83
    %97 = vmatpush.msra.mxu0 %v82
    %98 = vmatpush.msra.mxu0 %v81
    %99 = vmatpush.msra.mxu0 %v80
    %100 = vmatpush.msra.mxu0 %v79
    %101 = vmatpush.msra.mxu0 %v78
    %102 = vmatpush.msra.mxu0 %v77
    %103 = vmatpush.msra.mxu0 %v76
    %104 = vmatpush.msra.mxu0 %v75
    %105 = vmatpush.msra.mxu0 %v74
    %106 = vmatmul.f32.gmra.mxu0 %v66
    %v107 = vpop.f32.mrf.mxu0
    %v108 = vadd.f32 0.0, %v107
    %109 = vdwg.mxu0
    %vm110 = vcmask 261120
    %v112 = vsel %vm110, %v69, 0
    %114 = vmatpush.msra.mxu0 0.0
    %115 = vmatpush.msra.mxu0 0.0
    %116 = vmatpush.msra.mxu0 0.0
    %117 = vmatpush.msra.mxu0 0.0
    %118 = vmatpush.msra.mxu0 0.0
    %119 = vmatpush.msra.mxu0 0.0
    %120 = vmatpush.msra.mxu0 0.0
    %121 = vmatpush.msra.mxu0 0.0
    %122 = vmatpush.msra.mxu0 0.0
    %123 = vmatpush.msra.mxu0 0.0
    %124 = vmatpush.msra.mxu0 0.0
    %125 = vmatpush.msra.mxu0 0.0
    %126 = vmatpush.msra.mxu0 %v73
    %127 = vmatpush.msra.mxu0 %v72
    %128 = vmatpush.msra.mxu0 %v71
    %129 = vmatpush.msra.mxu0 %v70
    %130 = vmatmul.f32.gmra.mxu0 %v112
    %v131 = vpop.f32.mrf.mxu0
    %v132 = vadd.f32 %v108, %v131
    %133 = vdwg.mxu0
    %v134 = vld [vmem:[%s5] sm:$0x1]
    %v136 = vperm.slane %v134, 0
    %v138 = vadd.f32 %v132, %v136
    %v139 = vld [vmem:[%s6] sm:$0xff]
    %v140 = vld [vmem:[%s6 + $0x8] sm:$0xff]
    %v141 = vld [vmem:[%s6 + $0x10] sm:$0xff]
    %v142 = vld [vmem:[%s6 + $0x18] sm:$0xff]
    %v143 = vld [vmem:[%s7] sm:$0x1]
    %v145 = vperm.slane %v143, 0
    %v148 = vsel %vm110, %v138, 0
    %150 = vmatpush.msra.mxu0 0.0
    %151 = vmatpush.msra.mxu0 0.0
    %152 = vmatpush.msra.mxu0 0.0
    %153 = vmatpush.msra.mxu0 0.0
    %154 = vmatpush.msra.mxu0 0.0
    %155 = vmatpush.msra.mxu0 0.0
    %156 = vmatpush.msra.mxu0 0.0
    %157 = vmatpush.msra.mxu0 0.0
    %158 = vmatpush.msra.mxu0 0.0
    %159 = vmatpush.msra.mxu0 0.0
    %160 = vmatpush.msra.mxu0 0.0
    %161 = vmatpush.msra.mxu0 0.0
    %162 = vmatpush.msra.mxu0 %v142
    %163 = vmatpush.msra.mxu0 %v141
    %164 = vmatpush.msra.mxu0 %v140
    %165 = vmatpush.msra.mxu0 %v139
    %166 = vmatmul.f32.gmra.mxu0 %v148
    %v167 = vpop.f32.mrf.mxu0
    %v168 = vadd.f32 %v145, %v167
    %169 = vdwg.mxu0
    %170 = vst [vmem:[#allocation4] sm:$0xff] %v168
    %vm171 = vcmp.lt.s32.totalorder %v36, 8
    %v172 = vsel %vm171, %v168, -inf
    %173 = vmax.xlane.f32.xlu0 %v172
    %v174 = vpop.xlane.xlu0 %173
    %vm175 = vcmp.ge.f32.partialorder %v172, %v174
    %v176 = vsel %vm175, %v36, 128
    %v177 = vand.u32 %v176, 65535
    %v178 = vshra.s32 %v176, 16
    %v179 = vcvt.s32.f32 %v177
    %v180 = vcvt.s32.f32 %v178
    %181 = vmin.xlane.f32.xlu0 %v180
    %v182 = vpop.xlane.xlu0 %181
    %vm183 = vcmp.eq.f32.partialorder %v180, %v182
    %v184 = vsel %vm183, %v179, inf
    %185 = vmin.xlane.f32.xlu0 %v184
    %v186 = vpop.xlane.xlu0 %185
    %v187 = vcvt.f32.s32 %v186
    %v188 = vcvt.f32.s32 %v182
    %v189 = vshll.u32 %v188, 16
    %v190 = vadd.s32 %v189, %v187
    %vm191 = vcmask 7168
    %192 = vst.msk [vmem:[%s10] sm:$0xff] %vm191, %v190
    // Predicated region
    $region34: #{tpu_custom_call.1} parent=1 // pred_check
      _
    $region35: #{tpu_custom_call.1} parent=1 // pred_check_branch
      %194 = sbr.rel (0) target = $region37
    $region36: #{tpu_custom_call.1} parent=1 // pred_region
      %196 = vsyncadd [#allocation3], 0
      %s198 = sshll.u32 [#allocation2], 4
      %s199 = int_to_ptr.vmem [resolvable:$true] %s198
      %s200 = sshll.u32 %s8, 4
      %s201 = int_to_ptr.hbm [resolvable:$true] %s200
      %203 = dma.vmem_to_hbm [thread:$0]  %s199, 128, %s201, [#allocation3]
    $region37: #{tpu_custom_call.1} parent=1 // pred_fallthru
      _
    // Predicated region
    $region38: #{tpu_custom_call.1} parent=1 // pred_check
      _
    $region39: #{tpu_custom_call.1} parent=1 // pred_check_branch
      %205 = sbr.rel (0) target = $region41
    $region40: #{tpu_custom_call.1} parent=1 // pred_region
      %207 = vsyncadd [#allocation5], 0
      %s209 = sshll.u32 [#allocation4], 4
      %s210 = int_to_ptr.vmem [resolvable:$true] %s209
      %s211 = sshll.u32 %s9, 4
      %s212 = int_to_ptr.hbm [resolvable:$true] %s211
      %214 = dma.vmem_to_hbm [thread:$0]  %s210, 128, %s212, [#allocation5]
    $region41: #{tpu_custom_call.1} parent=1 // pred_fallthru
      _
    // Predicated region
    $region42: #{tpu_custom_call.1} parent=1 // pred_check
      _
    $region43: #{tpu_custom_call.1} parent=1 // pred_check_branch
      %216 = sbr.rel (0) target = $region45
    $region44: #{tpu_custom_call.1} parent=1 // pred_region
      _
    $region45: #{tpu_custom_call.1} parent=1 // pred_fallthru
      _
    // Predicated region
    $region46: #{tpu_custom_call.1} parent=1 // pred_check
      _
    $region47: #{tpu_custom_call.1} parent=1 // pred_check_branch
      %218 = sbr.rel (0) target = $region49
    $region48: #{tpu_custom_call.1} parent=1 // pred_region
      %220 = dma.done [#allocation3], 128
    $region49: #{tpu_custom_call.1} parent=1 // pred_fallthru
      _
    // Predicated region
    $region50: #{tpu_custom_call.1} parent=1 // pred_check
      _
    $region51: #{tpu_custom_call.1} parent=1 // pred_check_branch
      %222 = sbr.rel (0) target = $region53
    $region52: #{tpu_custom_call.1} parent=1 // pred_region
      %224 = dma.done [#allocation5], 128
    $region53: #{tpu_custom_call.1} parent=1 // pred_fallthru
      _
    // Predicated region
    $region54: #{tpu_custom_call.1} parent=1 // pred_check
      _
    $region55: #{tpu_custom_call.1} parent=1 // pred_check_branch
      %226 = sbr.rel (0) target = $region57
    $region56: #{tpu_custom_call.1} parent=1 // pred_region
      _
    $region57: #{tpu_custom_call.1} parent=1 // pred_fallthru
      _
    %227 = vsyncpa [#allocation3], 1
    %228 = vsyncpa [#allocation5], 1

</llo_original>
